<compile_context>
chip_gen: v7x
topology: tpu7x:2x2x1
jax: 0.10.0
libtpu: 0.0.40
codegen_flags: <defaults>
</compile_context>

<pallas_src>
import functools

import jax
import jax.numpy as jnp
from jax.experimental import pallas as pl
from jax.experimental.pallas import tpu as pltpu


def _cls_head_kernel(x_ref, w_ref, b_ref, o_ref, acc_ref):
    # x_ref:   (TB, TH) in VMEM
    # w_ref:   (1, TH)  in VMEM (PyTorch nn.Linear weight row, no transpose)
    # b_ref:   (1, 1)   in SMEM (scalar bias, f32)
    # o_ref:   (TB, 1)  in VMEM
    # acc_ref: (TB, 1)  f32 VMEM scratch (partial row sums across the H axis)
    k = pl.program_id(1)

    @pl.when(k == 0)
    def _():
        acc_ref[...] = jnp.zeros_like(acc_ref)

    prod = x_ref[...] * w_ref[...]                      # VPU broadcast multiply
    acc_ref[...] += jnp.sum(prod.astype(jnp.float32), axis=-1, keepdims=True)

    @pl.when(k == pl.num_programs(1) - 1)
    def _():
        logits = acc_ref[...] + b_ref[0, 0]             # f32 accumulate + bias
        o_ref[...] = jax.nn.sigmoid(logits).astype(o_ref.dtype)


_SUBLANE = {4: 8, 2: 16, 1: 32}                         # packed rows per sublane tile


def _round_up(x, m):
    return ((x + m - 1) // m) * m


def _vmem_capacity_bytes():
    # Generation-aware physical VMEM (128 MiB v5e/v6e, 64 MiB per-TC v7x).
    try:
        return int(pltpu.get_tpu_info().vmem_capacity_bytes)
    except Exception:
        return 64 * 1024 * 1024                         # conservative (v7x) fallback


def _per_row_bytes(block_h, x_itemsize, out_itemsize):
    # Per batch-row VMEM cost of one grid step:
    #   double-buffered x tile, product + f32-cast temporaries,
    #   lane-padded (TB,1) output blocks (double-buffered), f32 accumulator.
    return (2 * block_h * x_itemsize
            + block_h * x_itemsize + block_h * 4
            + 2 * 128 * out_itemsize
            + 128 * 4)


def _pick_blocks(batch, hidden, x_itemsize, out_itemsize, vmem_cap):
    sub = _SUBLANE.get(x_itemsize, 8)
    # Half of physical VMEM for the per-tile working set: leaves headroom for
    # compiler scratch / the resident weight row, and for the second
    # TensorCore's buffers when the batch axis is split on v7x.
    budget = vmem_cap // 2

    min_tb = max(sub, 256)
    block_h = hidden
    if (budget // _per_row_bytes(hidden, x_itemsize, out_itemsize) < min_tb
            and hidden % 128 == 0 and hidden > 128):
        # Very large H: split the reduction instead of shrinking TB below
        # ~256 rows.  Pick the largest 128-multiple divisor of H that still
        # lets min_tb rows fit (divisor => no padded garbage in the sum).
        bh = 128
        d = 128
        while d < hidden:
            if hidden % d == 0 and budget // _per_row_bytes(d, x_itemsize, out_itemsize) >= min_tb:
                bh = d
            d += 128
        block_h = bh

    rows = budget // _per_row_bytes(block_h, x_itemsize, out_itemsize)
    tb = min(rows, _round_up(batch, sub), 8192)
    tb = max(sub, (tb // sub) * sub)
    return tb, block_h


def _vmem_limit_bytes(block_b, block_h, x_itemsize, out_itemsize, vmem_cap):
    per_tile = (block_b * _per_row_bytes(block_h, x_itemsize, out_itemsize)
                + 2 * 8 * block_h * max(x_itemsize, 4))     # weight row blocks (sublane padded)
    limit = per_tile + (8 << 20)                             # pipeline / compiler headroom
    limit = max(limit, 32 << 20)
    return int(min(limit, (vmem_cap * 3) // 4))              # never exceed 3/4 of physical


def classification_head(cls_embedding, weight, bias, *, block_b=None, block_h=None):
    """cls_embedding: (B, H)
       weight:        (1, H)  (PyTorch nn.Linear layout, used as-is)
       bias:          (1,)
       returns:       (B, 1)  = sigmoid(cls_embedding @ weight.T + bias)
    """
    B, H = cls_embedding.shape
    assert weight.shape == (1, H)
    x_itemsize = jnp.dtype(cls_embedding.dtype).itemsize
    out_dtype = cls_embedding.dtype
    out_itemsize = jnp.dtype(out_dtype).itemsize
    vmem_cap = _vmem_capacity_bytes()

    auto_b, auto_h = _pick_blocks(B, H, x_itemsize, out_itemsize, vmem_cap)
    if block_b is None:
        block_b = auto_b
    if block_h is None:
        block_h = auto_h
    assert block_h == H or (block_h % 128 == 0 and H % block_h == 0), (
        "block_h must equal H or be a 128-multiple divisor of H")

    grid = (pl.cdiv(B, block_b), pl.cdiv(H, block_h))
    b2d = bias.reshape(1, 1).astype(jnp.float32)             # (1, 1) scalar for SMEM

    cost = pl.CostEstimate(
        flops=2 * B * H,
        transcendentals=B,
        bytes_accessed=(B * H * x_itemsize
                        + B * out_itemsize
                        + H * jnp.dtype(weight.dtype).itemsize
                        + 4))

    return pl.pallas_call(
        _cls_head_kernel,
        out_shape=jax.ShapeDtypeStruct((B, 1), out_dtype),
        grid=grid,
        in_specs=[
            pl.BlockSpec((block_b, block_h), lambda i, k: (i, k)),  # x tile
            pl.BlockSpec((1, block_h), lambda i, k: (0, k)),        # weight row
            pl.BlockSpec(memory_space=pltpu.SMEM),                  # scalar bias
        ],
        out_specs=pl.BlockSpec((block_b, 1), lambda i, k: (i, 0)),
        scratch_shapes=[pltpu.VMEM((block_b, 1), jnp.float32)],     # f32 accumulator
        compiler_params=pltpu.CompilerParams(
            dimension_semantics=("parallel", "arbitrary"),          # batch || , H reduce
            vmem_limit_bytes=_vmem_limit_bytes(
                block_b, block_h, x_itemsize, out_itemsize, vmem_cap),
        ),
        cost_estimate=cost,
    )(cls_embedding, weight, b2d)


def _reference(x, weight, bias):
    xf = x.astype(jnp.float32)
    wf = weight.astype(jnp.float32)
    bf = bias.astype(jnp.float32)
    return jax.nn.sigmoid(xf @ wf.T + bf)


if __name__ == "__main__":
    key = jax.random.PRNGKey(0)
    kx, kw, kb, kx2, kw2, kb2 = jax.random.split(key, 6)

    # --- Test 1: module-sized shapes (hidden_dim=32, batch=16), auto tiling. ---
    hidden_dim, batch = 32, 16
    x = jax.random.normal(kx, (batch, hidden_dim), dtype=jnp.float32)
    weight = jax.random.normal(kw, (1, hidden_dim), dtype=jnp.float32) * 0.1
    bias = jax.random.normal(kb, (1,), dtype=jnp.float32) * 0.1
    ref = _reference(x, weight, bias)

    out_auto = jax.block_until_ready(classification_head(x, weight, bias))
    assert out_auto.shape == (batch, 1)
    assert jnp.allclose(out_auto, ref, atol=1e-5, rtol=1e-5)

    # Forced small batch tile -> multi-step pipelined grid over batch.
    out_tiled = jax.block_until_ready(classification_head(x, weight, bias, block_b=8))
    assert jnp.allclose(out_tiled, ref, atol=1e-5, rtol=1e-5)

    # --- Test 2: H-reduction grid axis + partial (non-divisible) batch tile. ---
    hidden2, batch2 = 256, 24
    x2 = jax.random.normal(kx2, (batch2, hidden2), dtype=jnp.float32)
    weight2 = jax.random.normal(kw2, (1, hidden2), dtype=jnp.float32) * 0.1
    bias2 = jax.random.normal(kb2, (1,), dtype=jnp.float32) * 0.1
    ref2 = _reference(x2, weight2, bias2)

    out2 = jax.block_until_ready(
        classification_head(x2, weight2, bias2, block_b=16, block_h=128))
    assert out2.shape == (batch2, 1)
    assert jnp.allclose(out2, ref2, atol=1e-5, rtol=1e-5)

    # --- Test 3: bf16 inputs (sublane multiple 16, bf16 product -> f32 sum). ---
    x3 = x2[:16].astype(jnp.bfloat16)
    w3 = weight2.astype(jnp.bfloat16)
    ref3 = _reference(x3, w3, bias2)
    out3 = jax.block_until_ready(classification_head(x3, w3, bias2))
    assert out3.shape == (16, 1)
    assert jnp.allclose(out3.astype(jnp.float32), ref3, atol=2e-2, rtol=2e-2)

    print("KERNEL_OK")
</pallas_src>

<mosaic_0001>
module attributes {stable_mosaic.version = 11 : i64} {
  func.func @_cls_head_kernel(%arg0: i32, %arg1: i32, %arg2: memref<16x32xf32, #tpu.memory_space<vmem>>, %arg3: memref<1x32xf32, #tpu.memory_space<vmem>>, %arg4: memref<1x1xf32, #tpu.memory_space<smem>>, %arg5: memref<16x1xf32, #tpu.memory_space<vmem>>, %arg6: memref<16x1xf32, #tpu.memory_space<vmem>>) attributes {dimension_semantics = [#tpu.dimension_semantics<parallel>, #tpu.dimension_semantics<arbitrary>], iteration_bounds = array<i64: 1, 1>, scalar_prefetch = 0 : i64, scratch_operands = 1 : i64, tpu.core_type = #tpu.core_type<tc>, window_params = [{transform_indices = @transform_0, window_bounds = array<i64: 16, 32>}, {transform_indices = @transform_1, window_bounds = array<i64: 1, 32>}, {transform_indices = @transform_2, window_bounds = array<i64: 1, 1>}, {transform_indices = @transform_3, window_bounds = array<i64: 16, 1>}]} {
    %c0_i32 = arith.constant 0 : i32
    %0 = arith.cmpi eq, %arg1, %c0_i32 : i32
    %1 = arith.extui %0 : i1 to i32
    %c0_i32_0 = arith.constant 0 : i32
    %2 = arith.cmpi ne, %1, %c0_i32_0 : i32
    scf.if %2 {
      %cst_10 = arith.constant 0.000000e+00 : f32
      %15 = vector.broadcast %cst_10 : f32 to vector<16x1xf32>
      %c0_11 = arith.constant 0 : index
      %c0_12 = arith.constant 0 : index
      %16 = vector.load %arg6[%c0_11, %c0_12] : memref<16x1xf32, #tpu.memory_space<vmem>>, vector<16x1xf32>
      tpu.vector_store %arg6[%c0_11, %c0_12], %15 {strides = array<i32>} : memref<16x1xf32, #tpu.memory_space<vmem>>, vector<16x1xf32>,
    } else {
    }
    %c0 = arith.constant 0 : index
    %c0_1 = arith.constant 0 : index
    %3 = vector.load %arg2[%c0, %c0_1] : memref<16x32xf32, #tpu.memory_space<vmem>>, vector<16x32xf32>
    %c0_2 = arith.constant 0 : index
    %c0_3 = arith.constant 0 : index
    %4 = vector.load %arg3[%c0_2, %c0_3] : memref<1x32xf32, #tpu.memory_space<vmem>>, vector<1x32xf32>
    %5 = vector.broadcast %4 : vector<1x32xf32> to vector<16x32xf32>
    %6 = arith.mulf %3, %5 : vector<16x32xf32>
    %c0_4 = arith.constant 0 : index
    %c0_5 = arith.constant 0 : index
    %7 = vector.load %arg6[%c0_4, %c0_5] : memref<16x1xf32, #tpu.memory_space<vmem>>, vector<16x1xf32>
    %cst = arith.constant dense<0.000000e+00> : vector<16xf32>
    %8 = vector.multi_reduction <add>, %6, %cst [1] : vector<16x32xf32> to vector<16xf32>
    %9 = vector.shape_cast %8 : vector<16xf32> to vector<16x1xf32>
    %10 = arith.addf %7, %9 : vector<16x1xf32>
    %c0_6 = arith.constant 0 : index
    %c0_7 = arith.constant 0 : index
    %11 = vector.load %arg6[%c0_6, %c0_7] : memref<16x1xf32, #tpu.memory_space<vmem>>, vector<16x1xf32>
    tpu.vector_store %arg6[%c0_6, %c0_7], %10 {strides = array<i32>} : memref<16x1xf32, #tpu.memory_space<vmem>>, vector<16x1xf32>,
    %c0_i32_8 = arith.constant 0 : i32
    %12 = arith.cmpi eq, %arg1, %c0_i32_8 : i32
    %13 = arith.extui %12 : i1 to i32
    %c0_i32_9 = arith.constant 0 : i32
    %14 = arith.cmpi ne, %13, %c0_i32_9 : i32
    scf.if %14 {
      %c0_10 = arith.constant 0 : index
      %c0_11 = arith.constant 0 : index
      %15 = vector.load %arg6[%c0_10, %c0_11] : memref<16x1xf32, #tpu.memory_space<vmem>>, vector<16x1xf32>
      %c0_12 = arith.constant 0 : index
      %c0_13 = arith.constant 0 : index
      %16 = memref.load %arg4[%c0_12, %c0_13] : memref<1x1xf32, #tpu.memory_space<smem>>
      %17 = vector.broadcast %16 : f32 to vector<16x1xf32>
      %18 = arith.addf %15, %17 : vector<16x1xf32>
      %19 = arith.negf %18 : vector<16x1xf32>
      %20 = math.exp %19 : vector<16x1xf32>
      %cst_14 = arith.constant 1.000000e+00 : f32
      %21 = vector.broadcast %cst_14 : f32 to vector<16x1xf32>
      %22 = arith.addf %21, %20 : vector<16x1xf32>
      %23 = arith.divf %21, %22 : vector<16x1xf32>
      %c0_15 = arith.constant 0 : index
      %c0_16 = arith.constant 0 : index
      %24 = vector.load %arg5[%c0_15, %c0_16] : memref<16x1xf32, #tpu.memory_space<vmem>>, vector<16x1xf32>
      tpu.vector_store %arg5[%c0_15, %c0_16], %23 {strides = array<i32>} : memref<16x1xf32, #tpu.memory_space<vmem>>, vector<16x1xf32>,
    } else {
    }
    return
  }
  func.func @transform_0(%arg0: i32, %arg1: i32) -> (i32, i32) {
    %c0_i32 = arith.constant 0 : i32
    return %arg0, %arg1 : i32, i32
  }
  func.func @transform_1(%arg0: i32, %arg1: i32) -> (i32, i32) {
    %c0_i32 = arith.constant 0 : i32
    %c0_i32_0 = arith.constant 0 : i32
    return %c0_i32, %arg1 : i32, i32
  }
  func.func @transform_2(%arg0: i32, %arg1: i32) -> (i32, i32) {
    %c0_i32 = arith.constant 0 : i32
    %c0_i32_0 = arith.constant 0 : i32
    %c0_i32_1 = arith.constant 0 : i32
    return %c0_i32, %c0_i32_0 : i32, i32
  }
  func.func @transform_3(%arg0: i32, %arg1: i32) -> (i32, i32) {
    %c0_i32 = arith.constant 0 : i32
    %c0_i32_0 = arith.constant 0 : i32
    return %arg0, %c0_i32 : i32, i32
  }
}

</mosaic_0001>

<llo_original>
// kernel: tpu_custom_call.1
$region0: #{tpu_custom_call.1}
  #allocation0 [shape = 'u32[]', space=smem, size = 0x4, offset = 0x4, fixed_abs, tag = 'smem constant byte address 0x4 - core index']
  #allocation1 [shape = 'u32[144,128]{1,0:T(1,128)}', space=vmem, size = 0x12000, scoped, tag = 'internal scratch']
  #allocation2 [shape = 'f32[16,1]{1,0:T(8,128)}', space=vmem, size = 0x2000, scoped, tag = 'scratch operand']
  #allocation3 [shape = 'f32[1,1]{1,0:T(1,128)S(6)}', space=smem, size = 0x200, scoped, tag = 'scoped memory for tpu_custom_call.1']
  %s0 = inlined_call_operand.hbm [shape: f32[16,32], index: 0, kind: input, shape index: {}]
  %s1 = inlined_call_operand.vmem [shape: f32[1,32], index: 1, kind: input, shape index: {}]
  %s2 = inlined_call_operand.<no memory space> [shape: f32[1,1], index: 2, kind: input, shape index: {}]
  %s3 = inlined_call_operand.vmem [shape: f32[16,1], index: 3, kind: output, shape index: {}]
  %s4 = sld [smem:[#allocation0]]
  $region34: #{tpu_custom_call.1} parent=0
    _
  %s6 = ssub.s32 1, %s4
  %s7 = scalar_select 0, %s6, %s4
  %8 = sst [smem:[#allocation3]] %s2
  $region1: #{tpu_custom_call.1} parent=0
    #allocation4 [shape = 'u8[8192]{0}', space=vmem, size = 0x2000, scoped, tag = 'input window, operand 0, single buffered']
    #allocation5 [shape = 's32[1]{0}', space=sflag, size = 0x4, scoped, tag = 'scoped memory for tpu_custom_call.1']
    %9 = vsyncpa [#allocation5], 0
    // Predicated region
    $region2: #{tpu_custom_call.1} parent=1 // pred_check
      _
    $region3: #{tpu_custom_call.1} parent=1 // pred_check_branch
      %11 = sbr.rel (0) target = $region5
    $region4: #{tpu_custom_call.1} parent=1 // pred_region
      %s13 = ssub.s32 256, 256
      %14 = vsyncadd [#allocation5], %s13
      %s15 = sshll.u32 [#allocation4], 4
      %s16 = int_to_ptr.vmem [resolvable:$true] %s15
      %21 = dma.hbm_to_vmem [thread:$0]  %s0, 256, %s16, [#allocation5], 128, 128, 8
    $region5: #{tpu_custom_call.1} parent=1 // pred_fallthru
      _
    // Predicated region
    $region6: #{tpu_custom_call.1} parent=1 // pred_check
      _
    $region7: #{tpu_custom_call.1} parent=1 // pred_check_branch
      %23 = sbr.rel (0) target = $region9
    $region8: #{tpu_custom_call.1} parent=1 // pred_region
      _
    $region9: #{tpu_custom_call.1} parent=1 // pred_fallthru
      _
    // Predicated region
    $region10: #{tpu_custom_call.1} parent=1 // pred_check
      _
    $region11: #{tpu_custom_call.1} parent=1 // pred_check_branch
      %25 = sbr.rel (0) target = $region13
    $region12: #{tpu_custom_call.1} parent=1 // pred_region
      _
    $region13: #{tpu_custom_call.1} parent=1 // pred_fallthru
      _
    // Predicated region
    $region14: #{tpu_custom_call.1} parent=1 // pred_check
      _
    $region15: #{tpu_custom_call.1} parent=1 // pred_check_branch
      %27 = sbr.rel (0) target = $region17
    $region16: #{tpu_custom_call.1} parent=1 // pred_region
      %28 = dma.done [#allocation5], 256
    $region17: #{tpu_custom_call.1} parent=1 // pred_fallthru
      _
    %p29 = scmp.eq.s32.totalorder 0, 0
    // Predicated region
    $region18: #{tpu_custom_call.1} parent=1 // pred_check
      %p30 = pneg %p29
    $region19: #{tpu_custom_call.1} parent=1 // pred_check_branch
      %32 = sbr.rel (%p30) target = $region21
    $region20: #{tpu_custom_call.1} parent=1 // pred_region
      %vm33 = vcmask 7168
      %34 = vst.msk [vmem:[#allocation2] sm:$0xff] %vm33, 0.0
      %35 = vst.msk [vmem:[#allocation2 + $0x8] sm:$0xff] %vm33, 0.0
    $region21: #{tpu_custom_call.1} parent=1 // pred_fallthru
      _
    %v36 = vld [vmem:[#allocation4] sm:$0xff]
    %v37 = vld [vmem:[#allocation4 + $0x8] sm:$0xff]
    %v38 = vld [vmem:[%s1] sm:$0x1]
    %v40 = vlaneseq
    %v41 = vshrl.u32 %v40, 7
    %v42 = vsub.s32 0, %v41
    %v43 = vrot.slane %v38, %v42
    %v45 = vmul.f32 %v36, %v43
    %v46 = vmul.f32 %v37, %v43
    %v47 = vld [vmem:[#allocation2] sm:$0xff]
    %v48 = vld [vmem:[#allocation2 + $0x8] sm:$0xff]
    %vm49 = vcmask 261120
    %v50 = vsel %vm49, %v45, 0.0
    %51 = vadd.xlane.f32.xlu0 %v50
    %v52 = vpop.xlane.xlu0 %51
    %v53 = vsel %vm49, %v46, 0.0
    %54 = vadd.xlane.f32.xlu0 %v53
    %v55 = vpop.xlane.xlu0 %54
    %v56 = vadd.f32 %v47, %v52
    %v57 = vadd.f32 %v48, %v55
    %vm58 = vcmask 7168
    %59 = vst.msk [vmem:[#allocation2] sm:$0xff] %vm58, %v56
    %60 = vst.msk [vmem:[#allocation2 + $0x8] sm:$0xff] %vm58, %v57
    // Predicated region
    $region22: #{tpu_custom_call.1} parent=1 // pred_check
      %p61 = pneg %p29
    $region23: #{tpu_custom_call.1} parent=1 // pred_check_branch
      %63 = sbr.rel (%p61) target = $region25
    $region24: #{tpu_custom_call.1} parent=1 // pred_region
      %v64 = vld [vmem:[#allocation2] sm:$0xff]
      %v65 = vld [vmem:[#allocation2 + $0x8] sm:$0xff]
      %s66 = sld [smem:[#allocation3]]
      %v67 = vstv %s66
      %v68 = vadd.f32 %v64, %v67
      %v69 = vadd.f32 %v65, %v67
      %v70 = vxor.u32 %v68, 2147483648
      %v71 = vxor.u32 %v69, 2147483648
      %v72 = vmul.f32 %v70, 1.442695
      %v73 = vpow.pop %v72
      %v74 = vmul.f32 %v71, 1.442695
      %v75 = vpow.pop %v74
      %v76 = vadd.f32 %v73, 1.0
      %v77 = vadd.f32 %v75, 1.0
      %v78 = vrcp.pop %v76
      %v79 = vmul.f32 1.0, %v78
      %v80 = vrcp.pop %v77
      %v81 = vmul.f32 1.0, %v80
      %82 = vst.msk [vmem:[%s3] sm:$0xff] %vm58, %v79
      %83 = vst.msk [vmem:[%s3 + $0x8] sm:$0xff] %vm58, %v81
    $region25: #{tpu_custom_call.1} parent=1 // pred_fallthru
      _
    // Predicated region
    $region26: #{tpu_custom_call.1} parent=1 // pred_check
      _
    $region27: #{tpu_custom_call.1} parent=1 // pred_check_branch
      %85 = sbr.rel (0) target = $region29
    $region28: #{tpu_custom_call.1} parent=1 // pred_region
      _
    $region29: #{tpu_custom_call.1} parent=1 // pred_fallthru
      _
    // Predicated region
    $region30: #{tpu_custom_call.1} parent=1 // pred_check
      _
    $region31: #{tpu_custom_call.1} parent=1 // pred_check_branch
      %87 = sbr.rel (0) target = $region33
    $region32: #{tpu_custom_call.1} parent=1 // pred_region
      _
    $region33: #{tpu_custom_call.1} parent=1 // pred_fallthru
      _
    %88 = vsyncpa [#allocation5], 1

</llo_original>
